<compile_context>
chip_gen: v7x
topology: tpu7x:2x2x1
jax: 0.10.0
libtpu: 0.0.40
codegen_flags: <defaults>
</compile_context>

<pallas_src>
import math

import jax
import jax.numpy as jnp
from jax.experimental import pallas as pl
from jax.experimental.pallas import tpu as pltpu


def _roi_align_kernel(bidx_ref, feat_ref, m_ref, out_ref):
    """One block of TR RoIs (all from the same batch image) per grid step.

    feat_ref : (1, C, HW) int8      feature map of this block's batch element
    m_ref    : (HW, TR*P) bfloat16  transposed dense bilinear sampling block
    out_ref  : (C, TR*P)  int8      pooled + requantized output columns
    """
    del bidx_ref  # consumed only by the feature index_map (scalar prefetch)
    acc = jnp.dot(
        feat_ref[0].astype(jnp.bfloat16),
        m_ref[...],
        preferred_element_type=jnp.float32,
    )
    # Requantize: output scale == input scale, so just round + saturate to int8.
    # TODO(synk): exact Horizon BPU fixed-point rounding mode is not public;
    # round-half-to-even + saturation is used here.
    q = jnp.clip(jnp.round(acc), -128.0, 127.0)
    out_ref[...] = q.astype(jnp.int8)


def _axis_sampling_weights(start, bin_size, n_bins, sampling_ratio, size):
    """Per-axis bilinear sampling weights, summed over sampling points.

    start, bin_size: (R,) float32.  Returns (R, n_bins, size) float32.
    """
    s_frac = (jnp.arange(sampling_ratio, dtype=jnp.float32) + 0.5) / sampling_ratio
    bins = jnp.arange(n_bins, dtype=jnp.float32)
    # coords[r, p, s] = start[r] + (p + (s + 0.5)/S) * bin_size[r]
    coords = start[:, None, None] + (
        bins[None, :, None] + s_frac[None, None, :]
    ) * bin_size[:, None, None]

    valid = (coords >= -1.0) & (coords <= jnp.float32(size))
    c = jnp.maximum(coords, 0.0)
    low0 = jnp.floor(c).astype(jnp.int32)
    clamp = low0 >= size - 1
    low = jnp.where(clamp, size - 1, low0)
    high = jnp.where(clamp, size - 1, low0 + 1)
    c = jnp.where(clamp, jnp.float32(size - 1), c)
    frac = c - low.astype(jnp.float32)
    w_low = jnp.where(valid, 1.0 - frac, 0.0)
    w_high = jnp.where(valid, frac, 0.0)

    oh_low = jax.nn.one_hot(low, size, dtype=jnp.float32)
    oh_high = jax.nn.one_hot(high, size, dtype=jnp.float32)
    w = w_low[..., None] * oh_low + w_high[..., None] * oh_high  # (R, nb, S, size)
    return w.sum(axis=2)  # sum over sampling points along this axis


class RoIAlign:
    """Pallas/TPU equivalent of horizon quantized nn.RoIAlign (bilinear mode)."""

    ROI_QUANT_SCALE = 0.25  # contract asserted in the PyTorch forward

    def __init__(self, output_size, spatial_scale=1.0, sampling_ratio=1,
                 aligned=False, interpolate_mode="bilinear"):
        if interpolate_mode != "bilinear":
            # TODO(synk): 'nearest' interpolate_mode not implemented.
            raise NotImplementedError("only bilinear interpolate_mode supported")
        if sampling_ratio <= 0:
            # TODO(synk): adaptive sampling (sampling_ratio<=0) needs per-roi
            # dynamic grids; not implemented.
            raise NotImplementedError("sampling_ratio must be > 0")
        self.output_size = (
            (output_size, output_size) if isinstance(output_size, int) else tuple(output_size)
        )
        self.spatial_scale = float(spatial_scale)
        self.sampling_ratio = int(sampling_ratio)
        self.aligned = bool(aligned) if aligned is not None else False

    @staticmethod
    def _pick_roi_block(P, HW):
        """Smallest TR with TR*P a multiple of 128: lane-dense M^T / output
        tiles (unmasked vst, full MXU lane fill) with minimal zero-padding
        waste per batch element."""
        tr = 128 // math.gcd(P, 128)
        # TODO(synk): for very large feature maps the (HW, TR*P) bf16 M tile can
        # outgrow VMEM; the HW (reduction) dim would then need its own grid axis.
        return tr

    def __call__(self, feat_int8, feat_scale, rois_list):
        """feat_int8: (N, C, H, W) int8; rois_list: list of (L_i, 4) int32 boxes
        quantized with scale 0.25.  Returns (sum(L_i), C, out_h, out_w) int8 and
        the (unchanged) output scale."""
        N, C, H, W = feat_int8.shape
        out_h, out_w = self.output_size
        P = out_h * out_w
        HW = H * W
        S = self.sampling_ratio

        lengths = [int(r.shape[0]) for r in rois_list]
        rois_q = jnp.concatenate([r.astype(jnp.int32) for r in rois_list], axis=0)
        R = rois_q.shape[0]
        rois = rois_q.astype(jnp.float32) * self.ROI_QUANT_SCALE  # dequantize roi coords

        offset = 0.5 if self.aligned else 0.0
        x1 = rois[:, 0] * self.spatial_scale - offset
        y1 = rois[:, 1] * self.spatial_scale - offset
        x2 = rois[:, 2] * self.spatial_scale - offset
        y2 = rois[:, 3] * self.spatial_scale - offset
        roi_w = x2 - x1
        roi_h = y2 - y1
        if not self.aligned:
            roi_w = jnp.maximum(roi_w, 1.0)
            roi_h = jnp.maximum(roi_h, 1.0)
        bin_w = roi_w / out_w
        bin_h = roi_h / out_h

        wy = _axis_sampling_weights(y1, bin_h, out_h, S, H)  # (R, out_h, H)
        wx = _axis_sampling_weights(x1, bin_w, out_w, S, W)  # (R, out_w, W)
        # Dense sampling matrix: M[r, (ph,pw), (y,x)]
        m = jnp.einsum("rph,rqw->rpqhw", wy, wx).reshape(R, P, HW) / float(S * S)

        # --- Block RoIs: TR per grid step, padded per batch element so every
        # block references a single batch image (feature DMA picks one image).
        TR = self._pick_roi_block(P, HW)
        m_blocks = []
        block_batch = []       # batch index of each RoI block (scalar prefetch)
        real_idx = []          # positions of real RoIs inside the padded layout
        off_real = 0
        off_pad = 0
        for i, L in enumerate(lengths):
            m_i = m[off_real:off_real + L]
            pad = (-L) % TR
            if pad:
                m_i = jnp.concatenate(
                    [m_i, jnp.zeros((pad, P, HW), dtype=m.dtype)], axis=0)
            m_blocks.append(m_i)
            real_idx.extend(range(off_pad, off_pad + L))
            block_batch.extend([i] * ((L + pad) // TR))
            off_real += L
            off_pad += L + pad
        m_padded = jnp.concatenate(m_blocks, axis=0)                 # (Rp, P, HW)
        Rp = m_padded.shape[0]
        num_blocks = Rp // TR
        rows = TR * P                                                # multiple of 128
        # Transposed bf16 sampling matrix: (HW, Rp*P).  The RoI*pooled-bin axis
        # maps to lanes (multiple of 128) -> lane-dense MXU RHS and output.
        m_t = m_padded.reshape(Rp * P, HW).T.astype(jnp.bfloat16)
        block_batch = jnp.asarray(block_batch, dtype=jnp.int32)

        # Feature map stays channels-first (natural NCHW): (N, C, H*W).
        feat_chw = feat_int8.reshape(N, C, HW)

        m_tile = HW * rows * 2
        feat_tile = C * HW
        out_tile = C * rows
        vmem_need = 2 * (m_tile + feat_tile + out_tile) + (4 << 20)
        vmem_limit = int(min(max(vmem_need, 16 << 20), 48 << 20))

        grid_spec = pltpu.PrefetchScalarGridSpec(
            num_scalar_prefetch=1,
            grid=(num_blocks,),
            in_specs=[
                pl.BlockSpec((1, C, HW), lambda b, bidx: (bidx[b], 0, 0)),
                pl.BlockSpec((HW, rows), lambda b, bidx: (0, b)),
            ],
            out_specs=pl.BlockSpec((C, rows), lambda b, bidx: (0, b)),
        )
        cost = pl.CostEstimate(
            flops=2 * Rp * P * HW * C,
            transcendentals=0,
            bytes_accessed=m_t.size * 2 + num_blocks * C * HW + C * Rp * P,
        )
        out_flat = pl.pallas_call(
            _roi_align_kernel,
            out_shape=jax.ShapeDtypeStruct((C, Rp * P), jnp.int8),
            grid_spec=grid_spec,
            compiler_params=pltpu.CompilerParams(
                dimension_semantics=("parallel",),   # RoI blocks are independent
                vmem_limit_bytes=vmem_limit,
            ),
            cost_estimate=cost,
        )(block_batch, feat_chw, m_t)

        # Drop padded RoIs, back to PyTorch layout (R, C, out_h, out_w).
        out = out_flat.reshape(C, Rp, P).transpose(1, 0, 2)   # (Rp, C, P)
        if real_idx != list(range(Rp)):
            out = jnp.take(out, jnp.asarray(real_idx, dtype=jnp.int32), axis=0)
        out = out.reshape(R, C, out_h, out_w)
        return out, feat_scale


if __name__ == "__main__":
    key = jax.random.PRNGKey(0)
    k_feat, k_r0, k_r1 = jax.random.split(key, 3)

    N, C, H, W = 2, 8, 16, 16
    spatial_scale = 0.25          # feature map is 1/4 of the 64x64 input image
    feat_scale = 0.1              # quantization scale of the featuremap (bookkeeping only)

    feat_int8 = jax.random.randint(
        k_feat, (N, C, H, W), -128, 128, dtype=jnp.int32
    ).astype(jnp.int8)

    def make_rois(k, n_boxes):
        # int32 boxes quantized with scale 0.25 over a 64x64 input image,
        # i.e. integer values in [0, 256).
        raw = jax.random.randint(k, (n_boxes, 4), 0, 256, dtype=jnp.int32)
        x1 = jnp.minimum(raw[:, 0], raw[:, 2])
        x2 = jnp.maximum(raw[:, 0], raw[:, 2])
        y1 = jnp.minimum(raw[:, 1], raw[:, 3])
        y2 = jnp.maximum(raw[:, 1], raw[:, 3])
        return jnp.stack([x1, y1, x2, y2], axis=1)

    rois = [make_rois(k_r0, 4), make_rois(k_r1, 4)]  # list per batch element

    mod = RoIAlign(output_size=(2, 2), spatial_scale=spatial_scale,
                   sampling_ratio=2, aligned=False, interpolate_mode="bilinear")
    out, out_scale = mod(feat_int8, feat_scale, rois)
    out = jax.block_until_ready(out)

    assert out.shape == (8, C, 2, 2), out.shape
    assert out.dtype == jnp.int8, out.dtype
    print("KERNEL_OK")
</pallas_src>

<mosaic_0001>
module attributes {stable_mosaic.version = 11 : i64} {
  func.func @_roi_align_kernel(%arg0: i32, %arg1: memref<2xi32, #tpu.memory_space<smem>>, %arg2: memref<1x8x256xi8, #tpu.memory_space<vmem>>, %arg3: memref<256x128xbf16, #tpu.memory_space<vmem>>, %arg4: memref<8x128xi8, #tpu.memory_space<vmem>>) attributes {dimension_semantics = [#tpu.dimension_semantics<parallel>], iteration_bounds = array<i64: 2>, scalar_prefetch = 1 : i64, scratch_operands = 0 : i64, tpu.core_type = #tpu.core_type<tc>, window_params = [{transform_indices = @transform_0, window_bounds = array<i64: 1, 8, 256>}, {transform_indices = @transform_1, window_bounds = array<i64: 256, 128>}, {transform_indices = @transform_2, window_bounds = array<i64: 8, 128>}]} {
    %c0 = arith.constant 0 : index
    %c0_0 = arith.constant 0 : index
    %c0_1 = arith.constant 0 : index
    %0 = vector.load %arg2[%c0, %c0_0, %c0_1] : memref<1x8x256xi8, #tpu.memory_space<vmem>>, vector<1x8x256xi8>
    %1 = vector.shape_cast %0 : vector<1x8x256xi8> to vector<8x256xi8>
    %2 = arith.sitofp %1 : vector<8x256xi8> to vector<8x256xbf16>
    %c0_2 = arith.constant 0 : index
    %c0_3 = arith.constant 0 : index
    %3 = vector.load %arg3[%c0_2, %c0_3] : memref<256x128xbf16, #tpu.memory_space<vmem>>, vector<256x128xbf16>
    %cst = arith.constant dense<0.000000e+00> : vector<8x128xf32>
    %4 = tpu.matmul %2, %3, %cst {dimension_numbers = #tpu.dot_dimension_numbers<[1], [0], [0], [1], [0, 0, 1, 1], [], []>} : vector<8x256xbf16>, vector<256x128xbf16>, vector<8x128xf32> -> vector<8x128xf32>
    %5 = math.roundeven %4 : vector<8x128xf32>
    %cst_4 = arith.constant -1.280000e+02 : f32
    %cst_5 = arith.constant 1.270000e+02 : f32
    %6 = vector.broadcast %cst_4 : f32 to vector<8x128xf32>
    %7 = arith.maximumf %6, %5 : vector<8x128xf32>
    %8 = vector.broadcast %cst_5 : f32 to vector<8x128xf32>
    %9 = arith.minimumf %8, %7 : vector<8x128xf32>
    %10 = arith.fptosi %9 : vector<8x128xf32> to vector<8x128xi8>
    %c0_6 = arith.constant 0 : index
    %c0_7 = arith.constant 0 : index
    %11 = vector.load %arg4[%c0_6, %c0_7] : memref<8x128xi8, #tpu.memory_space<vmem>>, vector<8x128xi8>
    tpu.vector_store %arg4[%c0_6, %c0_7], %10 {strides = array<i32>} : memref<8x128xi8, #tpu.memory_space<vmem>>, vector<8x128xi8>,
    return
  }
  func.func @transform_0(%arg0: i32, %arg1: memref<2xi32, #tpu.memory_space<smem>>) -> (i32, i32, i32) {
    %0 = arith.index_cast %arg0 : i32 to index
    %1 = memref.load %arg1[%0] : memref<2xi32, #tpu.memory_space<smem>>
    %c0_i32 = arith.constant 0 : i32
    %c0_i32_0 = arith.constant 0 : i32
    %c0_i32_1 = arith.constant 0 : i32
    return %1, %c0_i32, %c0_i32_0 : i32, i32, i32
  }
  func.func @transform_1(%arg0: i32, %arg1: memref<2xi32, #tpu.memory_space<smem>>) -> (i32, i32) {
    %c0_i32 = arith.constant 0 : i32
    %c0_i32_0 = arith.constant 0 : i32
    return %c0_i32, %arg0 : i32, i32
  }
  func.func @transform_2(%arg0: i32, %arg1: memref<2xi32, #tpu.memory_space<smem>>) -> (i32, i32) {
    %c0_i32 = arith.constant 0 : i32
    %c0_i32_0 = arith.constant 0 : i32
    return %c0_i32, %arg0 : i32, i32
  }
}

</mosaic_0001>

<llo_original>
// kernel: tpu_custom_call.1
$region0: #{tpu_custom_call.1}
  #allocation0 [shape = 'u32[]', space=smem, size = 0x4, offset = 0x4, fixed_abs, tag = 'smem constant byte address 0x4 - core index']
  #allocation1 [shape = 'u32[144,128]{1,0:T(1,128)}', space=vmem, size = 0x12000, scoped, tag = 'internal scratch']
  #allocation2 [shape = 's32[1]{0}', space=sflag, size = 0x4, scoped, tag = 'scoped memory for tpu_custom_call.1']
  #allocation3 [shape = 'u8[512]{0}', space=smem, size = 0x200, scoped, tag = 'prefetched SMEM operand 0']
  %s0 = inlined_call_operand.hbm [shape: s32[2], index: 0, kind: input, shape index: {}]
  %s1 = inlined_call_operand.hbm [shape: s8[2,8,256], index: 1, kind: input, shape index: {}]
  %s2 = inlined_call_operand.hbm [shape: bf16[256,256], index: 2, kind: input, shape index: {}]
  %s3 = inlined_call_operand.hbm [shape: s8[8,256], index: 3, kind: output, shape index: {}]
  %s4 = sld [smem:[#allocation0]]
  $region49: #{tpu_custom_call.1} parent=0
    _
  %s6 = ssub.s32 1, %s4
  %s7 = scalar_select 0, %s6, %s4
  %9 = dma.hbm_to_smem %s0, 16, [#allocation3], [#allocation2]
  %10 = dma.done [#allocation2], 16
  %11 = sfence
  $region1: #{tpu_custom_call.1} parent=0
    #allocation4 [shape = 'u8[4096]{0}', space=vmem, size = 0x1000, scoped, tag = 'input window, operand 1']
    #allocation5 [shape = 's32[2]{0}', space=sflag, size = 0x8, scoped, tag = 'scoped memory for tpu_custom_call.1']
    #allocation6 [shape = 's32[2]{0}', space=sflag, size = 0x8, scoped, tag = 'scoped memory for tpu_custom_call.1']
    #allocation7 [shape = 'u8[131072]{0}', space=vmem, size = 0x20000, scoped, tag = 'input window, operand 2']
    #allocation8 [shape = 's32[2]{0}', space=sflag, size = 0x8, scoped, tag = 'scoped memory for tpu_custom_call.1']
    #allocation9 [shape = 'u8[2048]{0}', space=vmem, size = 0x800, scoped, tag = 'output window, operand 0']
    %12 = vsyncpa [#allocation5], 0
    %s13 = scalar_lea.sflag [#allocation5], 1
    %14 = vsyncpa %s13, 0
    %15 = vsyncpa [#allocation8], 0
    %s16 = scalar_lea.sflag [#allocation8], 1
    %17 = vsyncpa %s16, 0
    %18 = vsyncpa [#allocation6], 0
    %s19 = scalar_lea.sflag [#allocation6], 1
    %20 = vsyncpa %s19, 0
    loop: start=0, step=1, limit=4
    $region2: #{tpu_custom_call.1} parent=1 // loop_pre_header
      _
    $region3: #{tpu_custom_call.1} parent=1 // loop_header
      %s22 = sphi 0, %s26
      %p23 = scmp.ge.s32.totalorder %s22, 4
      %s34 = sphi 0, %s36
      %s37 = sphi 0, %s34
      %s38 = sphi 0, %s37
      %s54 = sphi 0, %s38
      %s60 = sphi 0, %s62
      %s63 = sphi 0, %s60
      %s64 = sphi 0, %s63
      %s80 = sphi 0, %s64
      %s86 = sphi 0, %s88
      %s89 = sphi 0, %s86
      %s90 = sphi 0, %s89
      %s106 = sphi 0, %s90
    $region4: #{tpu_custom_call.1} parent=1 // loop_header_branch
      %25 = sbr.rel (%p23) target = $region8
    $region5: #{tpu_custom_call.1} parent=1 // loop_body
      %s27 = ssub.s32 %s22, 1
      %s28 = ssub.s32 %s22, 2
      %s29 = sadd.s32 %s22, 1
      %s30 = sld [smem:[#allocation3 + %s22]]
      %s31 = sld [smem:[#allocation3 + %s29]]
      %s32 = ssub.s32 %s30, %s31
      %p33 = scmp.eq.s32.totalorder %s32, 0
      %s35 = sadd.s32 %s34, 1
      %s36 = scalar_select %p33, %s34, %s35
      %p39 = pneg %p33
      %p40 = scmp.eq.s32.totalorder %s22, 1
      %p41 = por %p39, %p40
      %p42 = scmp.ne.s32.totalorder %s34, %s37
      %p43 = scmp.eq.s32.totalorder %s22, 0
      %p44 = por %p42, %p43
      %p45 = scmp.ne.s32.totalorder %s34, %s37
      %p46 = scmp.eq.s32.totalorder %s27, 1
      %p47 = por %p45, %p46
      %p48 = scmp.ne.s32.totalorder %s37, %s38
      %p49 = scmp.eq.s32.totalorder %s27, 0
      %p50 = por %p48, %p49
      %p51 = scmp.ne.s32.totalorder %s37, %s38
      %p52 = scmp.eq.s32.totalorder %s28, 1
      %p53 = por %p51, %p52
      %p55 = scmp.ne.s32.totalorder %s38, %s54
      %p56 = scmp.eq.s32.totalorder %s28, 0
      %p57 = por %p55, %p56
      %s58 = ssub.s32 %s22, %s29
      %p59 = scmp.eq.s32.totalorder %s58, 0
      %s61 = sadd.s32 %s60, 1
      %s62 = scalar_select %p59, %s60, %s61
      %p65 = pneg %p59
      %p66 = scmp.eq.s32.totalorder %s22, 1
      %p67 = por %p65, %p66
      %p68 = scmp.ne.s32.totalorder %s60, %s63
      %p69 = scmp.eq.s32.totalorder %s22, 0
      %p70 = por %p68, %p69
      %p71 = scmp.ne.s32.totalorder %s60, %s63
      %p72 = scmp.eq.s32.totalorder %s27, 1
      %p73 = por %p71, %p72
      %p74 = scmp.ne.s32.totalorder %s63, %s64
      %p75 = scmp.eq.s32.totalorder %s27, 0
      %p76 = por %p74, %p75
      %p77 = scmp.ne.s32.totalorder %s63, %s64
      %p78 = scmp.eq.s32.totalorder %s28, 1
      %p79 = por %p77, %p78
      %p81 = scmp.ne.s32.totalorder %s64, %s80
      %p82 = scmp.eq.s32.totalorder %s28, 0
      %p83 = por %p81, %p82
      %s84 = ssub.s32 %s22, %s29
      %p85 = scmp.eq.s32.totalorder %s84, 0
      %s87 = sadd.s32 %s86, 1
      %s88 = scalar_select %p85, %s86, %s87
      %p91 = pneg %p85
      %p92 = scmp.eq.s32.totalorder %s22, 1
      %p93 = por %p91, %p92
      %p94 = scmp.ne.s32.totalorder %s86, %s89
      %p95 = scmp.eq.s32.totalorder %s22, 0
      %p96 = por %p94, %p95
      %p97 = scmp.ne.s32.totalorder %s86, %s89
      %p98 = scmp.eq.s32.totalorder %s27, 1
      %p99 = por %p97, %p98
      %p100 = scmp.ne.s32.totalorder %s89, %s90
      %p101 = scmp.eq.s32.totalorder %s27, 0
      %p102 = por %p100, %p101
      %p103 = scmp.ne.s32.totalorder %s89, %s90
      %p104 = scmp.eq.s32.totalorder %s28, 1
      %p105 = por %p103, %p104
      %p107 = scmp.ne.s32.totalorder %s90, %s106
      %p108 = scmp.eq.s32.totalorder %s28, 0
      %p109 = por %p107, %p108
      %p110 = scmp.le.s32.totalorder 1, %s22
      %p111 = scmp.lt.s32.totalorder %s22, 3
      %p112 = pnand %p110, %p111
      %p113 = pneg %p112
      // Predicated region
      $region9: #{tpu_custom_call.1} parent=5 // pred_check
        _
      $region10: #{tpu_custom_call.1} parent=5 // pred_check_branch
        %115 = sbr.rel (%p112) target = $region12
      $region11: #{tpu_custom_call.1} parent=5 // pred_region
        %s116 = ssub.s32 %s22, 1
      $region12: #{tpu_custom_call.1} parent=5 // pred_fallthru
        _
      %p117 = scmp.lt.s32.totalorder %s22, 2
      // Predicated region
      $region13: #{tpu_custom_call.1} parent=5 // pred_check
        %p118 = pneg %p117
      $region14: #{tpu_custom_call.1} parent=5 // pred_check_branch
        %120 = sbr.rel (%p118) target = $region16
      $region15: #{tpu_custom_call.1} parent=5 // pred_region
        // Predicated region
        $region17: #{tpu_custom_call.1} parent=15 // pred_check
          %p121 = pneg %p44
        $region18: #{tpu_custom_call.1} parent=15 // pred_check_branch
          %123 = sbr.rel (%p121) target = $region20
        $region19: #{tpu_custom_call.1} parent=15 // pred_region
          %s124 = sand.u32 %s34, 1
          %s125 = scalar_lea.sflag [#allocation5], %s124
          %s126 = sand.u32 %s34, 1
          %s127 = smul.addr %s126, 4
          %s128 = scalar_lea.vmem [#allocation4], %s127
          %s129 = sld [smem:[#allocation3 + %s22]]
          %s131 = ssub.s32 64, 64
          %132 = vsyncadd %s125, %s131
          %s133 = smul.addr %s129, 2
          %s134 = smul.addr %s133, 32
          %s135 = scalar_lea.hbm %s1, %s134
          %s137 = sshll.u32 %s128, 4
          %s138 = int_to_ptr.vmem [resolvable:$true] %s137
          %140 = dma.hbm_to_vmem [thread:$0]  %s135, 64, %s138, %s125
        $region20: #{tpu_custom_call.1} parent=15 // pred_fallthru
          _
        // Predicated region
        $region21: #{tpu_custom_call.1} parent=15 // pred_check
          %p141 = pneg %p70
        $region22: #{tpu_custom_call.1} parent=15 // pred_check_branch
          %143 = sbr.rel (%p141) target = $region24
        $region23: #{tpu_custom_call.1} parent=15 // pred_region
          %s144 = sand.u32 %s60, 1
          %s145 = scalar_lea.sflag [#allocation8], %s144
          %s146 = sand.u32 %s60, 1
          %s147 = smul.addr %s146, 128
          %s148 = scalar_lea.vmem [#allocation7], %s147
          %s150 = ssub.s32 2048, 2048
          %151 = vsyncadd %s145, %s150
          %s152 = smul.addr %s22, 64
          %s153 = scalar_lea.hbm %s2, %s152
          %s154 = sshll.u32 %s148, 4
          %s155 = int_to_ptr.vmem [resolvable:$true] %s154
          %160 = dma.hbm_to_vmem [thread:$0]  %s153, 2048, %s155, %s145, 128, 64, 4
        $region24: #{tpu_custom_call.1} parent=15 // pred_fallthru
          _
      $region16: #{tpu_custom_call.1} parent=5 // pred_fallthru
        _
      %p161 = scmp.le.s32.totalorder 1, %s22
      %p162 = scmp.lt.s32.totalorder %s22, 3
      %p163 = pnand %p161, %p162
      %p164 = pneg %p163
      // Predicated region
      $region25: #{tpu_custom_call.1} parent=5 // pred_check
        _
      $region26: #{tpu_custom_call.1} parent=5 // pred_check_branch
        %166 = sbr.rel (%p163) target = $region28
      $region27: #{tpu_custom_call.1} parent=5 // pred_region
        %s167 = ssub.s32 %s22, 1
        %s168 = sand.u32 %s37, 1
        %s169 = scalar_lea.sflag [#allocation5], %s168
        %s170 = sand.u32 %s37, 1
        %s171 = smul.addr %s170, 4
        %s172 = scalar_lea.vmem [#allocation4], %s171
        // Predicated region
        $region29: #{tpu_custom_call.1} parent=27 // pred_check
          %p173 = pneg %p50
        $region30: #{tpu_custom_call.1} parent=27 // pred_check_branch
          %175 = sbr.rel (%p173) target = $region32
        $region31: #{tpu_custom_call.1} parent=27 // pred_region
          %176 = dma.done %s169, 64
        $region32: #{tpu_custom_call.1} parent=27 // pred_fallthru
          _
        %s177 = sand.u32 %s63, 1
        %s178 = scalar_lea.sflag [#allocation8], %s177
        %s179 = sand.u32 %s63, 1
        %s180 = smul.addr %s179, 128
        %s181 = scalar_lea.vmem [#allocation7], %s180
        // Predicated region
        $region33: #{tpu_custom_call.1} parent=27 // pred_check
          %p182 = pneg %p76
        $region34: #{tpu_custom_call.1} parent=27 // pred_check_branch
          %184 = sbr.rel (%p182) target = $region36
        $region35: #{tpu_custom_call.1} parent=27 // pred_region
          %185 = dma.done %s178, 2048
        $region36: #{tpu_custom_call.1} parent=27 // pred_fallthru
          _
        %s186 = sand.u32 %s37, 1
        %s187 = scalar_lea.sflag [#allocation5], %s186
        %s188 = sand.u32 %s37, 1
        %s189 = smul.addr %s188, 4
        %s190 = scalar_lea.vmem [#allocation4], %s189
        %p191 = pneg %p50
        %p192 = pneg %p47
        %s193 = sand.u32 %s63, 1
        %s194 = scalar_lea.sflag [#allocation8], %s193
        %s195 = sand.u32 %s63, 1
        %s196 = smul.addr %s195, 128
        %s197 = scalar_lea.vmem [#allocation7], %s196
        %p198 = pneg %p76
        %p199 = pneg %p73
        %p200 = pneg %p102
        %p201 = pneg %p99
        %s202 = sand.u32 %s89, 1
        %s203 = scalar_lea.sflag [#allocation6], %s202
        %s204 = sand.u32 %s89, 1
        %s205 = smul.addr %s204, 2
        %s206 = scalar_lea.vmem [#allocation9], %s205
        %s207 = sld [smem:[#allocation3 + %s27]]
        %v209 = vld [vmem:[%s172] sm:$0xf]
        %v210 = vunpack.c.l.s8.bf16 %v209
        %v211 = vld [vmem:[%s181] sm:$0xf]
        %v212 = vld [vmem:[%s181 + $0x4] sm:$0xf]
        %v213 = vld [vmem:[%s181 + $0x8] sm:$0xf]
        %v214 = vld [vmem:[%s181 + $0xc] sm:$0xf]
        %v215 = vld [vmem:[%s181 + $0x10] sm:$0xf]
        %v216 = vld [vmem:[%s181 + $0x14] sm:$0xf]
        %v217 = vld [vmem:[%s181 + $0x18] sm:$0xf]
        %v218 = vld [vmem:[%s181 + $0x1c] sm:$0xf]
        %v219 = vld [vmem:[%s181 + $0x20] sm:$0xf]
        %v220 = vld [vmem:[%s181 + $0x24] sm:$0xf]
        %v221 = vld [vmem:[%s181 + $0x28] sm:$0xf]
        %v222 = vld [vmem:[%s181 + $0x2c] sm:$0xf]
        %v223 = vld [vmem:[%s181 + $0x30] sm:$0xf]
        %v224 = vld [vmem:[%s181 + $0x34] sm:$0xf]
        %v225 = vld [vmem:[%s181 + $0x38] sm:$0xf]
        %v226 = vld [vmem:[%s181 + $0x3c] sm:$0xf]
        %v227 = vld [vmem:[%s181 + $0x40] sm:$0xf]
        %v228 = vld [vmem:[%s181 + $0x44] sm:$0xf]
        %v229 = vld [vmem:[%s181 + $0x48] sm:$0xf]
        %v230 = vld [vmem:[%s181 + $0x4c] sm:$0xf]
        %v231 = vld [vmem:[%s181 + $0x50] sm:$0xf]
        %v232 = vld [vmem:[%s181 + $0x54] sm:$0xf]
        %v233 = vld [vmem:[%s181 + $0x58] sm:$0xf]
        %v234 = vld [vmem:[%s181 + $0x5c] sm:$0xf]
        %v235 = vld [vmem:[%s181 + $0x60] sm:$0xf]
        %v236 = vld [vmem:[%s181 + $0x64] sm:$0xf]
        %v237 = vld [vmem:[%s181 + $0x68] sm:$0xf]
        %v238 = vld [vmem:[%s181 + $0x6c] sm:$0xf]
        %v239 = vld [vmem:[%s181 + $0x70] sm:$0xf]
        %v240 = vld [vmem:[%s181 + $0x74] sm:$0xf]
        %v241 = vld [vmem:[%s181 + $0x78] sm:$0xf]
        %v242 = vld [vmem:[%s181 + $0x7c] sm:$0xf]
        %v244 = vunpack.c.l.b16 %v210
        %v245 = vunpack.c.h.b16 %v210
        %v246 = vpack.c.b16 %v244, %v244
        %v247 = vpack.c.b16 %v245, %v245
        %v282 = vunpack.c.l.b16 %v211
        %v283 = vunpack.c.l.b16 %v212
        %v284 = vunpack.c.l.b16 %v213
        %v285 = vunpack.c.l.b16 %v214
        %v286 = vunpack.c.l.b16 %v215
        %v287 = vunpack.c.l.b16 %v216
        %v288 = vunpack.c.l.b16 %v217
        %v289 = vunpack.c.l.b16 %v218
        %v290 = vunpack.c.l.b16 %v219
        %v291 = vunpack.c.l.b16 %v220
        %v292 = vunpack.c.l.b16 %v221
        %v293 = vunpack.c.l.b16 %v222
        %v294 = vunpack.c.l.b16 %v223
        %v295 = vunpack.c.l.b16 %v224
        %v296 = vunpack.c.l.b16 %v225
        %v297 = vunpack.c.l.b16 %v226
        %v298 = vunpack.c.l.b16 %v227
        %v299 = vunpack.c.l.b16 %v228
        %v300 = vunpack.c.l.b16 %v229
        %v301 = vunpack.c.l.b16 %v230
        %v302 = vunpack.c.l.b16 %v231
        %v303 = vunpack.c.l.b16 %v232
        %v304 = vunpack.c.l.b16 %v233
        %v305 = vunpack.c.l.b16 %v234
        %v306 = vunpack.c.l.b16 %v235
        %v307 = vunpack.c.l.b16 %v236
        %v308 = vunpack.c.l.b16 %v237
        %v309 = vunpack.c.l.b16 %v238
        %v310 = vunpack.c.l.b16 %v239
        %v311 = vunpack.c.l.b16 %v240
        %v312 = vunpack.c.l.b16 %v241
        %v313 = vunpack.c.l.b16 %v242
        %v314 = vpack.c.b16 %v283, %v282
        %v315 = vpack.c.b16 %v285, %v284
        %v316 = vpack.c.b16 %v287, %v286
        %v317 = vpack.c.b16 %v289, %v288
        %v318 = vpack.c.b16 %v291, %v290
        %v319 = vpack.c.b16 %v293, %v292
        %v320 = vpack.c.b16 %v295, %v294
        %v321 = vpack.c.b16 %v297, %v296
        %v322 = vpack.c.b16 %v299, %v298
        %v323 = vpack.c.b16 %v301, %v300
        %v324 = vpack.c.b16 %v303, %v302
        %v325 = vpack.c.b16 %v305, %v304
        %v326 = vpack.c.b16 %v307, %v306
        %v327 = vpack.c.b16 %v309, %v308
        %v328 = vpack.c.b16 %v311, %v310
        %v329 = vpack.c.b16 %v313, %v312
        %346 = vmatprep.subr.bf16.mxu0 0
        %347 = vmatpush1.bf16.msra.mxu0 %v314
        %348 = vmatprep.subr.bf16.mxu0 0
        %349 = vmatpush1.bf16.msra.mxu0 %v315
        %350 = vmatprep.subr.bf16.mxu0 0
        %351 = vmatpush1.bf16.msra.mxu0 %v316
        %352 = vmatprep.subr.bf16.mxu0 0
        %353 = vmatpush1.bf16.msra.mxu0 %v317
        %354 = vmatprep.subr.bf16.mxu0 0
        %355 = vmatpush1.bf16.msra.mxu0 %v318
        %356 = vmatprep.subr.bf16.mxu0 0
        %357 = vmatpush1.bf16.msra.mxu0 %v319
        %358 = vmatprep.subr.bf16.mxu0 0
        %359 = vmatpush1.bf16.msra.mxu0 %v320
        %360 = vmatprep.subr.bf16.mxu0 0
        %361 = vmatpush1.bf16.msra.mxu0 %v321
        %362 = vmatprep.subr.bf16.mxu0 0
        %363 = vmatpush1.bf16.msra.mxu0 %v322
        %364 = vmatprep.subr.bf16.mxu0 0
        %365 = vmatpush1.bf16.msra.mxu0 %v323
        %366 = vmatprep.subr.bf16.mxu0 0
        %367 = vmatpush1.bf16.msra.mxu0 %v324
        %368 = vmatprep.subr.bf16.mxu0 0
        %369 = vmatpush1.bf16.msra.mxu0 %v325
        %370 = vmatprep.subr.bf16.mxu0 0
        %371 = vmatpush1.bf16.msra.mxu0 %v326
        %372 = vmatprep.subr.bf16.mxu0 0
        %373 = vmatpush1.bf16.msra.mxu0 %v327
        %374 = vmatprep.subr.bf16.mxu0 0
        %375 = vmatpush1.bf16.msra.mxu0 %v328
        %376 = vmatprep.subr.bf16.mxu0 0
        %377 = vmatpush1.bf16.msra.mxu0 %v329
        %378 = vmatprep.mubr.bf16.mxu0 %v247
        %379 = vmatmul.mubr.bf16.gmra.mrb[0].mxu0 %v246
        %v380 = vpop.f32.mrb[0].mxu0
        %v381 = vadd.f32 0.0, %v380
        %v382 = vpop.f32.mrb[0].mxu0
        %v383 = vpop.f32.mrb[0].mxu0
        %v384 = vpop.f32.mrb[0].mxu0
        %385 = vdwg.mxu0
        %v386 = vround.ne.pseudo %v381
        %v387 = vmax.f32 %v386, -128.0
        %v388 = vmin.f32 %v387, 127.0
        %v389 = vtrunc.f32 %v388
        %v390 = vpack.c.f32.eXmY %v389, %v389, 312
        %v394 = vpack.c.b8 %v390, %v390
        %396 = vst [vmem:[%s206] sm:$0x3] %v394
        %s397 = sand.u32 %s89, 1
        %s398 = scalar_lea.sflag [#allocation6], %s397
        %s399 = sand.u32 %s89, 1
        %s400 = smul.addr %s399, 2
        %s401 = scalar_lea.vmem [#allocation9], %s400
        // Predicated region
        $region37: #{tpu_custom_call.1} parent=27 // pred_check
          %p402 = pneg %p99
        $region38: #{tpu_custom_call.1} parent=27 // pred_check_branch
          %404 = sbr.rel (%p402) target = $region40
        $region39: #{tpu_custom_call.1} parent=27 // pred_region
          %s406 = ssub.s32 32, 32
          %407 = vsyncadd %s398, %s406
          %s408 = smul.addr %s27, 32
          %s409 = scalar_lea.hbm %s3, %s408
          %s411 = sshll.u32 %s401, 4
          %s412 = int_to_ptr.vmem [resolvable:$true] %s411
          %414 = dma.vmem_to_hbm [thread:$0]  %s412, 32, %s409, %s398
        $region40: #{tpu_custom_call.1} parent=27 // pred_fallthru
          _
      $region28: #{tpu_custom_call.1} parent=5 // pred_fallthru
        _
      %p415 = scmp.le.s32.totalorder 2, %s22
      // Predicated region
      $region41: #{tpu_custom_call.1} parent=5 // pred_check
        %p416 = pneg %p415
      $region42: #{tpu_custom_call.1} parent=5 // pred_check_branch
        %418 = sbr.rel (%p416) target = $region44
      $region43: #{tpu_custom_call.1} parent=5 // pred_region
        %s419 = ssub.s32 %s22, 2
        // Predicated region
        $region45: #{tpu_custom_call.1} parent=43 // pred_check
          %p420 = pneg %p105
        $region46: #{tpu_custom_call.1} parent=43 // pred_check_branch
          %422 = sbr.rel (%p420) target = $region48
        $region47: #{tpu_custom_call.1} parent=43 // pred_region
          %s423 = sand.u32 %s90, 1
          %s424 = scalar_lea.sflag [#allocation6], %s423
          %s425 = sand.u32 %s90, 1
          %s426 = smul.addr %s425, 2
          %s427 = scalar_lea.vmem [#allocation9], %s426
          %428 = dma.done %s424, 32
        $region48: #{tpu_custom_call.1} parent=43 // pred_fallthru
          _
      $region44: #{tpu_custom_call.1} parent=5 // pred_fallthru
        _
    $region6: #{tpu_custom_call.1} parent=1 // loop_footer
      %s26 = sadd.s32 1, %s22
    $region7: #{tpu_custom_call.1} parent=1 // loop_footer_branch
      %21 = sbr.rel target = $region3
    $region8: #{tpu_custom_call.1} parent=1 // loop_exit
      _
    %429 = vsyncpa [#allocation5], 1
    %s430 = scalar_lea.sflag [#allocation5], 1
    %431 = vsyncpa %s430, 1
    %432 = vsyncpa [#allocation8], 1
    %s433 = scalar_lea.sflag [#allocation8], 1
    %434 = vsyncpa %s433, 1
    %435 = vsyncpa [#allocation6], 1
    %s436 = scalar_lea.sflag [#allocation6], 1
    %437 = vsyncpa %s436, 1

</llo_original>
